<compile_context>
chip_gen: v5e
topology: v5e:2x2
jax: 0.10.0
libtpu: 0.0.40
codegen_flags: <defaults>
</compile_context>

<pallas_src>
import jax
import jax.numpy as jnp
from jax.experimental import pallas as pl
from jax.experimental.pallas import tpu as pltpu


def _make_downsample_kernel(channels_first):
    def kernel(p_ref, w_ref, b_ref, o_ref):
        # p_ref: (Ht+1, Wo+1, 4*Cin)  space-to-depth row-tile (+1 halo row/col)
        # w_ref: (16*Cin, Cout)       merged-tap weight matrix
        # b_ref: (1, Cout)            f32 bias
        # o_ref: (Cout, Ht*Wo) if channels_first else (Ht*Wo, Cout)
        htp1, wp2, c4 = p_ref.shape
        ht, wo = htp1 - 1, wp2 - 1

        # Fused im2col in VMEM: four shifted slabs of the space-to-depth block
        # concatenated along the channel (lane) axis -> (Ht*Wo, 16*Cin).
        slabs = [p_ref[dh:dh + ht, dw:dw + wo, :]
                 for dh in (0, 1) for dw in (0, 1)]
        lhs = jnp.concatenate(slabs, axis=-1).reshape(ht * wo, 4 * c4)

        # Single MXU matmul, K = 16*Cin, f32 accumulation inside the MXU.
        acc = jnp.dot(lhs, w_ref[...], preferred_element_type=jnp.float32)
        acc = acc + b_ref[...]

        if channels_first:
            # Small Cout: transpose once so the stored tile is lane-dense.
            o_ref[...] = acc.T.astype(o_ref.dtype)
        else:
            # Cout >= 128: already lane-dense, skip the in-kernel transpose.
            o_ref[...] = acc.astype(o_ref.dtype)

    return kernel


def _choose_row_tile(ho, wo, lane_unit, small_frame_rows=2048):
    """Pick an output-row tile Ht (divisor of Ho) whose M-tile is lane-aligned
    and of moderate size; use the whole frame when it is already small."""
    if ho * wo <= small_frame_rows:
        return ho
    for ht in range(1, ho + 1):
        if ho % ht:
            continue
        m = ht * wo
        if m % lane_unit:
            continue
        if m >= 512:
            return ht
    return ho


def _default_vmem_limit(ht, wp2, c4, cout, in_itemsize, out_itemsize):
    mt = ht * (wp2 - 1)
    in_blk = (ht + 1) * wp2 * c4 * in_itemsize
    w_bytes = 4 * c4 * cout * in_itemsize
    out_blk = mt * cout * out_itemsize
    lhs_bytes = mt * 4 * c4 * in_itemsize
    acc_bytes = mt * cout * 4
    est = 2 * (in_blk + out_blk) + 2 * w_bytes + 3 * (lhs_bytes + acc_bytes)
    est += 1 << 20
    return int(min(max(2 * est, 32 * 1024 * 1024), 100 * 1024 * 1024))


def downsample_forward(x, weight, bias, *, matmul_dtype=jnp.bfloat16,
                       row_tile_h=None, channels_first_out=None,
                       vmem_limit_bytes=None):
    """x: (B, T, Cin, H, W); weight: (Cout, Cin, 4, 4); bias: (Cout,)."""
    B, T, C, H, W = x.shape
    Cout, Cin, KH, KW = weight.shape
    assert C == Cin and KH == 4 and KW == 4
    assert H % 2 == 0 and W % 2 == 0, "even spatial dims expected"
    N = B * T
    Ho, Wo = H // 2, W // 2
    Hp2, Wp2 = Ho + 1, Wo + 1
    C4 = 4 * C
    K = 16 * C

    if channels_first_out is None:
        channels_first_out = Cout < 128
    lane_unit = 128 if channels_first_out else 8

    # ---- row-tile selection (bounded VMEM, big enough M per matmul) ----
    Ht = _choose_row_tile(Ho, Wo, lane_unit) if row_tile_h is None else row_tile_h
    if Ho % Ht != 0 or (Ht != Ho and (Ht * Wo) % lane_unit != 0):
        Ht = Ho                       # correctness-first fallback: whole frame
    n_tiles = Ho // Ht
    Mt = Ht * Wo

    in_dtype = x.dtype if matmul_dtype is None else matmul_dtype

    # ---- host prep: NCHW -> padded space-to-depth (fuses into ~one pass) ----
    x_nhwc = jnp.transpose(x.reshape(N, C, H, W), (0, 2, 3, 1))      # (N,H,W,C)
    x_pad = jnp.pad(x_nhwc, ((0, 0), (1, 1), (1, 1), (0, 0)))        # (N,H+2,W+2,C)
    p = x_pad.reshape(N, Hp2, 2, Wp2, 2, C).transpose(0, 1, 3, 2, 4, 5)
    p = p.reshape(N, Hp2, Wp2, C4).astype(in_dtype)                  # (N,Hp2,Wp2,4C)
    if n_tiles == 1:
        p_tiled = p[:, None]                                         # (N,1,Hp2,Wp2,4C)
    else:
        # 1-row halo duplicated per tile (tiny overhead, clean Blocked specs).
        rows = jnp.arange(n_tiles)[:, None] * Ht + jnp.arange(Ht + 1)[None, :]
        p_tiled = p[:, rows]                                         # (N,nt,Ht+1,Wp2,4C)

    # Merged-tap weights: K order = (dh, dw, pr, pc, c) matching the in-kernel
    # concat of the space-to-depth (pr, pc, c) channel blocks.
    w2d = weight.reshape(Cout, C, 2, 2, 2, 2).transpose(2, 4, 3, 5, 1, 0)
    w2d = w2d.reshape(K, Cout).astype(in_dtype)
    b2d = bias.reshape(1, Cout).astype(jnp.float32)

    if vmem_limit_bytes is None:
        vmem_limit_bytes = _default_vmem_limit(
            Ht, Wp2, C4, Cout,
            jnp.dtype(in_dtype).itemsize, jnp.dtype(x.dtype).itemsize)

    if channels_first_out:
        out_shape = jax.ShapeDtypeStruct((N, Cout, Ho * Wo), x.dtype)
        out_spec = pl.BlockSpec((None, Cout, Mt), lambda n, r: (n, 0, r))
    else:
        out_shape = jax.ShapeDtypeStruct((N, Ho * Wo, Cout), x.dtype)
        out_spec = pl.BlockSpec((None, Mt, Cout), lambda n, r: (n, r, 0))

    out = pl.pallas_call(
        _make_downsample_kernel(channels_first_out),
        out_shape=out_shape,
        grid=(N, n_tiles),
        in_specs=[
            pl.BlockSpec((None, None, Ht + 1, Wp2, C4),
                         lambda n, r: (n, r, 0, 0, 0)),
            pl.BlockSpec((K, Cout), lambda n, r: (0, 0)),
            pl.BlockSpec((1, Cout), lambda n, r: (0, 0)),
        ],
        out_specs=out_spec,
        compiler_params=pltpu.CompilerParams(
            dimension_semantics=("parallel", "parallel"),
            vmem_limit_bytes=vmem_limit_bytes),
    )(p_tiled, w2d, b2d)

    if channels_first_out:
        return out.reshape(B, T, Cout, Ho, Wo)
    out = out.reshape(B, T, Ho, Wo, Cout)
    return jnp.transpose(out, (0, 1, 4, 2, 3))


def _reference_forward(x, weight, bias):
    B, T, C, H, W = x.shape
    Cout = weight.shape[0]
    xf = x.reshape(B * T, C, H, W)
    out = jax.lax.conv_general_dilated(
        xf, weight, window_strides=(2, 2), padding=((1, 1), (1, 1)),
        dimension_numbers=("NCHW", "OIHW", "NCHW"))
    out = out + bias.reshape(1, -1, 1, 1)
    return out.reshape(B, T, Cout, H // 2, W // 2)


if __name__ == "__main__":
    key = jax.random.PRNGKey(0)
    k_x, k_w, k_b, k_x2, k_w2, k_b2 = jax.random.split(key, 6)

    def make_params(kw, kb, cin, cout):
        fan_in = cin * 16
        bound = 1.0 / (fan_in ** 0.5)
        w = jax.random.uniform(kw, (cout, cin, 4, 4),
                               minval=-bound, maxval=bound, dtype=jnp.float32)
        b = jax.random.uniform(kb, (cout,),
                               minval=-bound, maxval=bound, dtype=jnp.float32)
        return w, b

    # Config A/B: module-like small shapes, Cout < 128 (channels-first path).
    B, T, Cin, Cout, H, W = 2, 2, 4, 8, 16, 16
    x = jax.random.normal(k_x, (B, T, Cin, H, W), dtype=jnp.float32)
    w, b = make_params(k_w, k_b, Cin, Cout)
    ref = _reference_forward(x, w, b)

    # A) exact f32 path
    out_f32 = jax.block_until_ready(
        downsample_forward(x, w, b, matmul_dtype=jnp.float32))
    assert out_f32.shape == (B, T, Cout, H // 2, W // 2), out_f32.shape
    assert jnp.allclose(out_f32, ref, atol=1e-5, rtol=1e-5), \
        float(jnp.max(jnp.abs(out_f32 - ref)))

    # B) default bf16-operand path (f32 accumulation)
    out_bf16 = jax.block_until_ready(downsample_forward(x, w, b))
    assert jnp.allclose(out_bf16, ref, atol=3e-2, rtol=3e-2), \
        float(jnp.max(jnp.abs(out_bf16 - ref)))

    # C) Cout >= 128 (lane-dense output, no in-kernel transpose) + row tiling.
    B2, T2, Cin2, Cout2, H2, W2 = 1, 2, 4, 128, 32, 32
    x2 = jax.random.normal(k_x2, (B2, T2, Cin2, H2, W2), dtype=jnp.float32)
    w2, b2 = make_params(k_w2, k_b2, Cin2, Cout2)
    ref2 = _reference_forward(x2, w2, b2)
    out2 = jax.block_until_ready(
        downsample_forward(x2, w2, b2, row_tile_h=8))
    assert out2.shape == (B2, T2, Cout2, H2 // 2, W2 // 2), out2.shape
    assert jnp.allclose(out2, ref2, atol=3e-2, rtol=3e-2), \
        float(jnp.max(jnp.abs(out2 - ref2)))

    print("KERNEL_OK")
</pallas_src>

<mosaic_0001>
module attributes {stable_mosaic.version = 11 : i64} {
  func.func @kernel(%arg0: i32, %arg1: i32, %arg2: memref<1x1x9x9x16xf32, #tpu.memory_space<vmem>>, %arg3: memref<64x8xf32, #tpu.memory_space<vmem>>, %arg4: memref<1x8xf32, #tpu.memory_space<vmem>>, %arg5: memref<1x8x64xf32, #tpu.memory_space<vmem>>) attributes {dimension_semantics = [#tpu.dimension_semantics<parallel>, #tpu.dimension_semantics<parallel>], iteration_bounds = array<i64: 4, 1>, scalar_prefetch = 0 : i64, scratch_operands = 0 : i64, tpu.core_type = #tpu.core_type<tc>, window_params = [{transform_indices = @transform_0, window_bounds = array<i64: 1, 1, 9, 9, 16>}, {pipeline_mode = #tpu.pipeline_mode<synchronous>, transform_indices = @transform_1, window_bounds = array<i64: 64, 8>}, {pipeline_mode = #tpu.pipeline_mode<synchronous>, transform_indices = @transform_2, window_bounds = array<i64: 1, 8>}, {transform_indices = @transform_3, window_bounds = array<i64: 1, 8, 64>}]} {
    %c0 = arith.constant 0 : index
    %c0_0 = arith.constant 0 : index
    %c0_1 = arith.constant 0 : index
    %c0_2 = arith.constant 0 : index
    %c0_3 = arith.constant 0 : index
    %0 = vector.load %arg2[%c0, %c0_0, %c0_1, %c0_2, %c0_3] : memref<1x1x9x9x16xf32, #tpu.memory_space<vmem>>, vector<1x1x8x8x16xf32>
    %1 = vector.shape_cast %0 : vector<1x1x8x8x16xf32> to vector<8x8x16xf32>
    %c0_4 = arith.constant 0 : index
    %c0_5 = arith.constant 0 : index
    %c0_6 = arith.constant 0 : index
    %c1 = arith.constant 1 : index
    %c0_7 = arith.constant 0 : index
    %2 = vector.load %arg2[%c0_4, %c0_5, %c0_6, %c1, %c0_7] : memref<1x1x9x9x16xf32, #tpu.memory_space<vmem>>, vector<1x1x8x8x16xf32>
    %3 = vector.shape_cast %2 : vector<1x1x8x8x16xf32> to vector<8x8x16xf32>
    %c0_8 = arith.constant 0 : index
    %c0_9 = arith.constant 0 : index
    %c1_10 = arith.constant 1 : index
    %c0_11 = arith.constant 0 : index
    %c0_12 = arith.constant 0 : index
    %4 = vector.load %arg2[%c0_8, %c0_9, %c1_10, %c0_11, %c0_12] : memref<1x1x9x9x16xf32, #tpu.memory_space<vmem>>, vector<1x1x8x8x16xf32>
    %5 = vector.shape_cast %4 : vector<1x1x8x8x16xf32> to vector<8x8x16xf32>
    %c0_13 = arith.constant 0 : index
    %c0_14 = arith.constant 0 : index
    %c1_15 = arith.constant 1 : index
    %c1_16 = arith.constant 1 : index
    %c0_17 = arith.constant 0 : index
    %6 = vector.load %arg2[%c0_13, %c0_14, %c1_15, %c1_16, %c0_17] : memref<1x1x9x9x16xf32, #tpu.memory_space<vmem>>, vector<1x1x8x8x16xf32>
    %7 = vector.shape_cast %6 : vector<1x1x8x8x16xf32> to vector<8x8x16xf32>
    %8 = tpu.concatenate %1, %3, %5, %7 in 2 : vector<8x8x16xf32>, vector<8x8x16xf32>, vector<8x8x16xf32>, vector<8x8x16xf32> -> vector<8x8x64xf32>
    %9 = vector.shape_cast %8 : vector<8x8x64xf32> to vector<64x64xf32>
    %c0_18 = arith.constant 0 : index
    %c0_19 = arith.constant 0 : index
    %10 = vector.load %arg3[%c0_18, %c0_19] : memref<64x8xf32, #tpu.memory_space<vmem>>, vector<64x8xf32>
    %cst = arith.constant dense<0.000000e+00> : vector<64x8xf32>
    %11 = tpu.matmul %9, %10, %cst {dimension_numbers = #tpu.dot_dimension_numbers<[1], [0], [0], [1], [0, 0, 1, 1], [], []>} : vector<64x64xf32>, vector<64x8xf32>, vector<64x8xf32> -> vector<64x8xf32>
    %c0_20 = arith.constant 0 : index
    %c0_21 = arith.constant 0 : index
    %12 = vector.load %arg4[%c0_20, %c0_21] : memref<1x8xf32, #tpu.memory_space<vmem>>, vector<1x8xf32>
    %13 = vector.broadcast %12 : vector<1x8xf32> to vector<64x8xf32>
    %14 = arith.addf %11, %13 : vector<64x8xf32>
    %15 = tpu.transpose %14, [1, 0] : vector<64x8xf32> -> vector<8x64xf32>
    %c0_22 = arith.constant 0 : index
    %c0_23 = arith.constant 0 : index
    %c0_24 = arith.constant 0 : index
    %16 = vector.load %arg5[%c0_22, %c0_23, %c0_24] : memref<1x8x64xf32, #tpu.memory_space<vmem>>, vector<1x8x64xf32>
    %17 = vector.shape_cast %16 : vector<1x8x64xf32> to vector<8x64xf32>
    %18 = vector.shape_cast %15 : vector<8x64xf32> to vector<1x8x64xf32>
    tpu.vector_store %arg5[%c0_22, %c0_23, %c0_24], %18 {strides = array<i32>} : memref<1x8x64xf32, #tpu.memory_space<vmem>>, vector<1x8x64xf32>,
    return
  }
  func.func @transform_0(%arg0: i32, %arg1: i32) -> (i32, i32, i32, i32, i32) {
    %c0_i32 = arith.constant 0 : i32
    %c0_i32_0 = arith.constant 0 : i32
    %c0_i32_1 = arith.constant 0 : i32
    %c0_i32_2 = arith.constant 0 : i32
    return %arg0, %arg1, %c0_i32, %c0_i32_0, %c0_i32_1 : i32, i32, i32, i32, i32
  }
  func.func @transform_1(%arg0: i32, %arg1: i32) -> (i32, i32) {
    %c0_i32 = arith.constant 0 : i32
    %c0_i32_0 = arith.constant 0 : i32
    %c0_i32_1 = arith.constant 0 : i32
    return %c0_i32, %c0_i32_0 : i32, i32
  }
  func.func @transform_2(%arg0: i32, %arg1: i32) -> (i32, i32) {
    %c0_i32 = arith.constant 0 : i32
    %c0_i32_0 = arith.constant 0 : i32
    %c0_i32_1 = arith.constant 0 : i32
    return %c0_i32, %c0_i32_0 : i32, i32
  }
  func.func @transform_3(%arg0: i32, %arg1: i32) -> (i32, i32, i32) {
    %c0_i32 = arith.constant 0 : i32
    %c0_i32_0 = arith.constant 0 : i32
    return %arg0, %c0_i32, %arg1 : i32, i32, i32
  }
}

</mosaic_0001>

<llo_original>
// kernel: tpu_custom_call.1
$region0: #{tpu_custom_call.1}
  #allocation0 [shape = 'u32[]', space=smem, size = 0x4, offset = 0x4, fixed_abs, tag = 'smem constant byte address 0x4 - core index']
  #allocation1 [shape = 'u32[72,128]{1,0:T(1,128)}', space=vmem, size = 0x9000, scoped, tag = 'internal scratch']
  %s0 = inlined_call_operand.vmem [shape: f32[4,1,9,9,16], index: 0, kind: input, shape index: {}]
  %s1 = inlined_call_operand.vmem [shape: f32[64,8], index: 1, kind: input, shape index: {}]
  %s2 = inlined_call_operand.vmem [shape: f32[1,8], index: 2, kind: input, shape index: {}]
  %s3 = inlined_call_operand.hbm [shape: f32[4,8,64], index: 3, kind: output, shape index: {}]
  %s4 = sld [smem:[#allocation0]]
  $region45: #{tpu_custom_call.1} parent=0
    _
  %s6 = ssub.s32 1, %s4
  %s7 = scalar_select 0, %s6, %s4
  $region1: #{tpu_custom_call.1} parent=0
    #allocation2 [shape = 'u8[8192]{0}', space=vmem, size = 0x2000, scoped, tag = 'output window, operand 0']
    #allocation3 [shape = 's32[2]{0}', space=sflag, size = 0x8, scoped, tag = 'scoped memory for tpu_custom_call.1']
    %8 = vsyncpa [#allocation3], 0
    %s9 = scalar_lea.sflag [#allocation3], 1
    %10 = vsyncpa %s9, 0
    loop: start=0, step=1, limit=6
    $region2: #{tpu_custom_call.1} parent=1 // loop_pre_header
      _
    $region3: #{tpu_custom_call.1} parent=1 // loop_header
      %s12 = sphi 0, %s16
      %p13 = scmp.ge.s32.totalorder %s12, 6
      %s19 = sphi 0, %s31
      %s20 = sphi 0, %s27
      %s21 = sphi 0, %s19
      %s22 = sphi 0, %s20
      %s23 = sphi 0, %s21
      %s24 = sphi 0, %s22
      %s36 = sphi 0, %s38
      %s39 = sphi 0, %s36
      %s40 = sphi 0, %s39
      %s56 = sphi 0, %s40
      %s60 = sphi 0, %s60
      %s62 = sphi 0, %s60
      %s63 = sphi 0, %s62
      %s77 = sphi 0, %s63
      %s81 = sphi 0, %s81
      %s83 = sphi 0, %s81
      %s84 = sphi 0, %s83
      %s98 = sphi 0, %s84
      %s106 = sphi 0, %s108
      %s109 = sphi 0, %s106
      %s110 = sphi 0, %s109
      %s126 = sphi 0, %s110
    $region4: #{tpu_custom_call.1} parent=1 // loop_header_branch
      %15 = sbr.rel (%p13) target = $region8
    $region5: #{tpu_custom_call.1} parent=1 // loop_body
      %s17 = ssub.s32 %s12, 1
      %s18 = ssub.s32 %s12, 2
      %s25 = sadd.s32 1, %s20
      %p26 = scmp.ge.s32.totalorder %s25, 1
      %s27 = scalar_select %p26, 0, %s25
      %s28 = sadd.s32 1, %s19
      %s29 = scalar_select %p26, %s28, %s19
      %p30 = scmp.ge.s32.totalorder %s29, 4
      %s31 = scalar_select %p30, 0, %s29
      %s32 = ssub.s32 %s19, %s31
      %s33 = ssub.s32 %s20, %s27
      %s34 = sor.u32 %s32, %s33
      %p35 = scmp.eq.s32.totalorder %s34, 0
      %s37 = sadd.s32 %s36, 1
      %s38 = scalar_select %p35, %s36, %s37
      %p41 = pneg %p35
      %p42 = scmp.eq.s32.totalorder %s12, 3
      %p43 = por %p41, %p42
      %p44 = scmp.ne.s32.totalorder %s36, %s39
      %p45 = scmp.eq.s32.totalorder %s12, 0
      %p46 = por %p44, %p45
      %p47 = scmp.ne.s32.totalorder %s36, %s39
      %p48 = scmp.eq.s32.totalorder %s17, 3
      %p49 = por %p47, %p48
      %p50 = scmp.ne.s32.totalorder %s39, %s40
      %p51 = scmp.eq.s32.totalorder %s17, 0
      %p52 = por %p50, %p51
      %p53 = scmp.ne.s32.totalorder %s39, %s40
      %p54 = scmp.eq.s32.totalorder %s18, 3
      %p55 = por %p53, %p54
      %p57 = scmp.ne.s32.totalorder %s40, %s56
      %p58 = scmp.eq.s32.totalorder %s18, 0
      %p59 = por %p57, %p58
      %s61 = sadd.s32 %s60, 1
      %p64 = scmp.eq.s32.totalorder %s12, 3
      %p65 = scmp.ne.s32.totalorder %s60, %s62
      %p66 = scmp.eq.s32.totalorder %s12, 0
      %p67 = por %p65, %p66
      %p68 = scmp.ne.s32.totalorder %s60, %s62
      %p69 = scmp.eq.s32.totalorder %s17, 3
      %p70 = por %p68, %p69
      %p71 = scmp.ne.s32.totalorder %s62, %s63
      %p72 = scmp.eq.s32.totalorder %s17, 0
      %p73 = por %p71, %p72
      %p74 = scmp.ne.s32.totalorder %s62, %s63
      %p75 = scmp.eq.s32.totalorder %s18, 3
      %p76 = por %p74, %p75
      %p78 = scmp.ne.s32.totalorder %s63, %s77
      %p79 = scmp.eq.s32.totalorder %s18, 0
      %p80 = por %p78, %p79
      %s82 = sadd.s32 %s81, 1
      %p85 = scmp.eq.s32.totalorder %s12, 3
      %p86 = scmp.ne.s32.totalorder %s81, %s83
      %p87 = scmp.eq.s32.totalorder %s12, 0
      %p88 = por %p86, %p87
      %p89 = scmp.ne.s32.totalorder %s81, %s83
      %p90 = scmp.eq.s32.totalorder %s17, 3
      %p91 = por %p89, %p90
      %p92 = scmp.ne.s32.totalorder %s83, %s84
      %p93 = scmp.eq.s32.totalorder %s17, 0
      %p94 = por %p92, %p93
      %p95 = scmp.ne.s32.totalorder %s83, %s84
      %p96 = scmp.eq.s32.totalorder %s18, 3
      %p97 = por %p95, %p96
      %p99 = scmp.ne.s32.totalorder %s84, %s98
      %p100 = scmp.eq.s32.totalorder %s18, 0
      %p101 = por %p99, %p100
      %s102 = ssub.s32 %s19, %s31
      %s103 = ssub.s32 %s20, %s27
      %s104 = sor.u32 %s102, %s103
      %p105 = scmp.eq.s32.totalorder %s104, 0
      %s107 = sadd.s32 %s106, 1
      %s108 = scalar_select %p105, %s106, %s107
      %p111 = pneg %p105
      %p112 = scmp.eq.s32.totalorder %s12, 3
      %p113 = por %p111, %p112
      %p114 = scmp.ne.s32.totalorder %s106, %s109
      %p115 = scmp.eq.s32.totalorder %s12, 0
      %p116 = por %p114, %p115
      %p117 = scmp.ne.s32.totalorder %s106, %s109
      %p118 = scmp.eq.s32.totalorder %s17, 3
      %p119 = por %p117, %p118
      %p120 = scmp.ne.s32.totalorder %s109, %s110
      %p121 = scmp.eq.s32.totalorder %s17, 0
      %p122 = por %p120, %p121
      %p123 = scmp.ne.s32.totalorder %s109, %s110
      %p124 = scmp.eq.s32.totalorder %s18, 3
      %p125 = por %p123, %p124
      %p127 = scmp.ne.s32.totalorder %s110, %s126
      %p128 = scmp.eq.s32.totalorder %s18, 0
      %p129 = por %p127, %p128
      %p130 = scmp.le.s32.totalorder 1, %s12
      %p131 = scmp.lt.s32.totalorder %s12, 5
      %p132 = pnand %p130, %p131
      %p133 = pneg %p132
      // Predicated region
      $region9: #{tpu_custom_call.1} parent=5 // pred_check
        _
      $region10: #{tpu_custom_call.1} parent=5 // pred_check_branch
        %135 = sbr.rel (%p132) target = $region12
      $region11: #{tpu_custom_call.1} parent=5 // pred_region
        %s136 = ssub.s32 %s12, 1
        // Predicated region
        $region13: #{tpu_custom_call.1} parent=11 // pred_check
          %p137 = pneg %p73
        $region14: #{tpu_custom_call.1} parent=11 // pred_check_branch
          %139 = sbr.rel (%p137) target = $region16
        $region15: #{tpu_custom_call.1} parent=11 // pred_region
          _
        $region16: #{tpu_custom_call.1} parent=11 // pred_fallthru
          _
        // Predicated region
        $region17: #{tpu_custom_call.1} parent=11 // pred_check
          %p140 = pneg %p94
        $region18: #{tpu_custom_call.1} parent=11 // pred_check_branch
          %142 = sbr.rel (%p140) target = $region20
        $region19: #{tpu_custom_call.1} parent=11 // pred_region
          _
        $region20: #{tpu_custom_call.1} parent=11 // pred_fallthru
          _
      $region12: #{tpu_custom_call.1} parent=5 // pred_fallthru
        _
      %p143 = scmp.lt.s32.totalorder %s12, 4
      // Predicated region
      $region21: #{tpu_custom_call.1} parent=5 // pred_check
        %p144 = pneg %p143
      $region22: #{tpu_custom_call.1} parent=5 // pred_check_branch
        %146 = sbr.rel (%p144) target = $region24
      $region23: #{tpu_custom_call.1} parent=5 // pred_region
        // Predicated region
        $region25: #{tpu_custom_call.1} parent=23 // pred_check
          %p147 = pneg %p46
        $region26: #{tpu_custom_call.1} parent=23 // pred_check_branch
          %149 = sbr.rel (%p147) target = $region28
        $region27: #{tpu_custom_call.1} parent=23 // pred_region
          %p150 = scmp.lt.s32.totalorder %s19, 3
          %s151 = scalar_select %p150, %s19, 3
          %p152 = scmp.lt.s32.totalorder %s20, 0
          %s153 = scalar_select %p152, %s20, 0
          %s154 = smul.addr %s153, 18
          %s155 = smul.addr %s151, 18
          %s156 = sadd.s32 %s154, %s155
          %s157 = smul.addr %s156, 8
          %s158 = scalar_lea.vmem %s0, %s157
        $region28: #{tpu_custom_call.1} parent=23 // pred_fallthru
          _
      $region24: #{tpu_custom_call.1} parent=5 // pred_fallthru
        _
      %p159 = scmp.le.s32.totalorder 1, %s12
      %p160 = scmp.lt.s32.totalorder %s12, 5
      %p161 = pnand %p159, %p160
      %p162 = pneg %p161
      // Predicated region
      $region29: #{tpu_custom_call.1} parent=5 // pred_check
        _
      $region30: #{tpu_custom_call.1} parent=5 // pred_check_branch
        %164 = sbr.rel (%p161) target = $region32
      $region31: #{tpu_custom_call.1} parent=5 // pred_region
        %s165 = ssub.s32 %s12, 1
        %p166 = scmp.lt.s32.totalorder %s21, 3
        %s167 = scalar_select %p166, %s21, 3
        %p168 = scmp.lt.s32.totalorder %s22, 0
        %s169 = scalar_select %p168, %s22, 0
        %s170 = smul.addr %s169, 18
        %s171 = smul.addr %s167, 18
        %s172 = sadd.s32 %s170, %s171
        %s173 = smul.addr %s172, 8
        %s174 = scalar_lea.vmem %s0, %s173
        %p175 = pneg %p52
        %p176 = pneg %p49
        %p177 = pneg %p73
        %p178 = pneg %p70
        %p179 = pneg %p94
        %p180 = pneg %p91
        %p181 = pneg %p122
        %p182 = pneg %p119
        %s183 = sand.u32 %s109, 1
        %s184 = scalar_lea.sflag [#allocation3], %s183
        %s185 = sand.u32 %s109, 1
        %s186 = smul.addr %s185, 8
        %s187 = scalar_lea.vmem [#allocation2], %s186
        %p188 = scmp.lt.s32.totalorder %s21, 3
        %s189 = scalar_select %p188, %s21, 3
        %p190 = scmp.lt.s32.totalorder %s22, 0
        %s191 = scalar_select %p190, %s22, 0
        %s192 = smul.addr %s191, 18
        %s193 = smul.addr %s189, 18
        %s194 = sadd.s32 %s192, %s193
        %s195 = smul.addr %s194, 8
        %s196 = scalar_lea.vmem %s0, %s195
        %v197 = vld [vmem:[%s196] sm:$0xff]
        %v198 = vld [vmem:[%s196 + $0x10] sm:$0xff]
        %v199 = vld [vmem:[%s196 + $0x20] sm:$0xff]
        %v200 = vld [vmem:[%s196 + $0x30] sm:$0xff]
        %v201 = vld [vmem:[%s196 + $0x40] sm:$0xff]
        %v202 = vld [vmem:[%s196 + $0x50] sm:$0xff]
        %v203 = vld [vmem:[%s196 + $0x60] sm:$0xff]
        %v204 = vld [vmem:[%s196 + $0x70] sm:$0xff]
        %v205 = vld [vmem:[%s196 + $0x1] sm:$0xff]
        %v206 = vld [vmem:[%s196 + $0x11] sm:$0xff]
        %v207 = vld [vmem:[%s196 + $0x21] sm:$0xff]
        %v208 = vld [vmem:[%s196 + $0x31] sm:$0xff]
        %v209 = vld [vmem:[%s196 + $0x41] sm:$0xff]
        %v210 = vld [vmem:[%s196 + $0x51] sm:$0xff]
        %v211 = vld [vmem:[%s196 + $0x61] sm:$0xff]
        %v212 = vld [vmem:[%s196 + $0x71] sm:$0xff]
        %s213 = scalar_lea.vmem %s196, 16
        %v214 = vld [vmem:[%s213] sm:$0xff]
        %v215 = vld [vmem:[%s213 + $0x10] sm:$0xff]
        %v216 = vld [vmem:[%s213 + $0x20] sm:$0xff]
        %v217 = vld [vmem:[%s213 + $0x30] sm:$0xff]
        %v218 = vld [vmem:[%s213 + $0x40] sm:$0xff]
        %v219 = vld [vmem:[%s213 + $0x50] sm:$0xff]
        %v220 = vld [vmem:[%s213 + $0x60] sm:$0xff]
        %v221 = vld [vmem:[%s213 + $0x70] sm:$0xff]
        %v222 = vld [vmem:[%s213 + $0x1] sm:$0xff]
        %v223 = vld [vmem:[%s213 + $0x11] sm:$0xff]
        %v224 = vld [vmem:[%s213 + $0x21] sm:$0xff]
        %v225 = vld [vmem:[%s213 + $0x31] sm:$0xff]
        %v226 = vld [vmem:[%s213 + $0x41] sm:$0xff]
        %v227 = vld [vmem:[%s213 + $0x51] sm:$0xff]
        %v228 = vld [vmem:[%s213 + $0x61] sm:$0xff]
        %v229 = vld [vmem:[%s213 + $0x71] sm:$0xff]
        %238 = vrot.lane.b32.xlu0 %v205, 16
        %v239 = vpop.permute.xlu0 %238
        %240 = vrot.lane.b32.xlu0 %v206, 16
        %v241 = vpop.permute.xlu0 %240
        %242 = vrot.lane.b32.xlu0 %v207, 16
        %v243 = vpop.permute.xlu0 %242
        %244 = vrot.lane.b32.xlu0 %v208, 16
        %v245 = vpop.permute.xlu0 %244
        %246 = vrot.lane.b32.xlu0 %v209, 16
        %v247 = vpop.permute.xlu0 %246
        %248 = vrot.lane.b32.xlu0 %v210, 16
        %v249 = vpop.permute.xlu0 %248
        %250 = vrot.lane.b32.xlu0 %v211, 16
        %v251 = vpop.permute.xlu0 %250
        %252 = vrot.lane.b32.xlu0 %v212, 16
        %v253 = vpop.permute.xlu0 %252
        %270 = vrot.lane.b32.xlu0 %v214, 32
        %v271 = vpop.permute.xlu0 %270
        %272 = vrot.lane.b32.xlu0 %v215, 32
        %v273 = vpop.permute.xlu0 %272
        %274 = vrot.lane.b32.xlu0 %v216, 32
        %v275 = vpop.permute.xlu0 %274
        %276 = vrot.lane.b32.xlu0 %v217, 32
        %v277 = vpop.permute.xlu0 %276
        %278 = vrot.lane.b32.xlu0 %v218, 32
        %v279 = vpop.permute.xlu0 %278
        %280 = vrot.lane.b32.xlu0 %v219, 32
        %v281 = vpop.permute.xlu0 %280
        %282 = vrot.lane.b32.xlu0 %v220, 32
        %v283 = vpop.permute.xlu0 %282
        %284 = vrot.lane.b32.xlu0 %v221, 32
        %v285 = vpop.permute.xlu0 %284
        %302 = vrot.lane.b32.xlu0 %v222, 48
        %v303 = vpop.permute.xlu0 %302
        %304 = vrot.lane.b32.xlu0 %v223, 48
        %v305 = vpop.permute.xlu0 %304
        %306 = vrot.lane.b32.xlu0 %v224, 48
        %v307 = vpop.permute.xlu0 %306
        %308 = vrot.lane.b32.xlu0 %v225, 48
        %v309 = vpop.permute.xlu0 %308
        %310 = vrot.lane.b32.xlu0 %v226, 48
        %v311 = vpop.permute.xlu0 %310
        %312 = vrot.lane.b32.xlu0 %v227, 48
        %v313 = vpop.permute.xlu0 %312
        %314 = vrot.lane.b32.xlu0 %v228, 48
        %v315 = vpop.permute.xlu0 %314
        %316 = vrot.lane.b32.xlu0 %v229, 48
        %v317 = vpop.permute.xlu0 %316
        %vm326 = vcmask 130048
        %v327 = vsel %vm326, %v197, %v239
        %v328 = vsel %vm326, %v198, %v241
        %v329 = vsel %vm326, %v199, %v243
        %v330 = vsel %vm326, %v200, %v245
        %v331 = vsel %vm326, %v201, %v247
        %v332 = vsel %vm326, %v202, %v249
        %v333 = vsel %vm326, %v203, %v251
        %v334 = vsel %vm326, %v204, %v253
        %vm335 = vcmask 261120
        %v336 = vsel %vm335, %v327, %v271
        %v337 = vsel %vm335, %v328, %v273
        %v338 = vsel %vm335, %v329, %v275
        %v339 = vsel %vm335, %v330, %v277
        %v340 = vsel %vm335, %v331, %v279
        %v341 = vsel %vm335, %v332, %v281
        %v342 = vsel %vm335, %v333, %v283
        %v343 = vsel %vm335, %v334, %v285
        %vm344 = vcmask 392192
        %v345 = vsel %vm344, %v336, %v303
        %v346 = vsel %vm344, %v337, %v305
        %v347 = vsel %vm344, %v338, %v307
        %v348 = vsel %vm344, %v339, %v309
        %v349 = vsel %vm344, %v340, %v311
        %v350 = vsel %vm344, %v341, %v313
        %v351 = vsel %vm344, %v342, %v315
        %v352 = vsel %vm344, %v343, %v317
        %v353 = vld [vmem:[%s1] sm:$0xff]
        %v354 = vld [vmem:[%s1 + $0x8] sm:$0xff]
        %v355 = vld [vmem:[%s1 + $0x10] sm:$0xff]
        %v356 = vld [vmem:[%s1 + $0x18] sm:$0xff]
        %v357 = vld [vmem:[%s1 + $0x20] sm:$0xff]
        %v358 = vld [vmem:[%s1 + $0x28] sm:$0xff]
        %v359 = vld [vmem:[%s1 + $0x30] sm:$0xff]
        %v360 = vld [vmem:[%s1 + $0x38] sm:$0xff]
        %v361 = vld [vmem:[%s2] sm:$0x1]
        %v363 = vperm.slane %v361, 0
        %vm365 = vcmask 523264
        %v367 = vsel %vm365, %v345, 0
        %v370 = vsel %vm365, %v346, 0
        %v373 = vsel %vm365, %v347, 0
        %v376 = vsel %vm365, %v348, 0
        %v379 = vsel %vm365, %v349, 0
        %v382 = vsel %vm365, %v350, 0
        %v385 = vsel %vm365, %v351, 0
        %v388 = vsel %vm365, %v352, 0
        %390 = vmatpush.msra.mxu0 0.0
        %391 = vmatpush.msra.mxu0 0.0
        %392 = vmatpush.msra.mxu0 0.0
        %393 = vmatpush.msra.mxu0 0.0
        %394 = vmatpush.msra.mxu0 0.0
        %395 = vmatpush.msra.mxu0 0.0
        %396 = vmatpush.msra.mxu0 0.0
        %397 = vmatpush.msra.mxu0 0.0
        %398 = vmatpush.msra.mxu0 %v360
        %399 = vmatpush.msra.mxu0 %v359
        %400 = vmatpush.msra.mxu0 %v358
        %401 = vmatpush.msra.mxu0 %v357
        %402 = vmatpush.msra.mxu0 %v356
        %403 = vmatpush.msra.mxu0 %v355
        %404 = vmatpush.msra.mxu0 %v354
        %405 = vmatpush.msra.mxu0 %v353
        %406 = vmatmul.f32.gmra.mxu0 %v367
        %v407 = vpop.f32.mrf.mxu0
        %v408 = vadd.f32 %v363, %v407
        %409 = vmatmul.f32.gmra.mxu0 %v370
        %v410 = vpop.f32.mrf.mxu0
        %v411 = vadd.f32 %v363, %v410
        %412 = vmatmul.f32.gmra.mxu0 %v373
        %v413 = vpop.f32.mrf.mxu0
        %v414 = vadd.f32 %v363, %v413
        %415 = vmatmul.f32.gmra.mxu0 %v376
        %v416 = vpop.f32.mrf.mxu0
        %v417 = vadd.f32 %v363, %v416
        %418 = vmatmul.f32.gmra.mxu0 %v379
        %v419 = vpop.f32.mrf.mxu0
        %v420 = vadd.f32 %v363, %v419
        %421 = vmatmul.f32.gmra.mxu0 %v382
        %v422 = vpop.f32.mrf.mxu0
        %v423 = vadd.f32 %v363, %v422
        %424 = vmatmul.f32.gmra.mxu0 %v385
        %v425 = vpop.f32.mrf.mxu0
        %v426 = vadd.f32 %v363, %v425
        %427 = vmatmul.f32.gmra.mxu0 %v388
        %v428 = vpop.f32.mrf.mxu0
        %v429 = vadd.f32 %v363, %v428
        %430 = vdwg.mxu0
        %431 = vxpose.xlu0.b32.start [1/16] %v408, 128
        %432 = vxpose.xlu0.b32.cont [2/16] %v411, 128
        %433 = vxpose.xlu0.b32.cont [3/16] %v414, 128
        %434 = vxpose.xlu0.b32.cont [4/16] %v417, 128
        %435 = vxpose.xlu0.b32.cont [5/16] %v420, 128
        %436 = vxpose.xlu0.b32.cont [6/16] %v423, 128
        %437 = vxpose.xlu0.b32.cont [7/16] %v426, 128
        %438 = vxpose.xlu0.b32.cont [8/16] %v429, 128
        %439 = vxpose.xlu0.b32.cont [9/16] 0.0, 128
        %440 = vxpose.xlu0.b32.cont [10/16] 0.0, 128
        %441 = vxpose.xlu0.b32.cont [11/16] 0.0, 128
        %442 = vxpose.xlu0.b32.cont [12/16] 0.0, 128
        %443 = vxpose.xlu0.b32.cont [13/16] 0.0, 128
        %444 = vxpose.xlu0.b32.cont [14/16] 0.0, 128
        %445 = vxpose.xlu0.b32.cont [15/16] 0.0, 128
        %446 = vxpose.xlu0.b32.end [16/16] 0.0, 128
        %v447 = vpop.trf.xlu0
        %v448 = vpop.trf.xlu0
        %v449 = vpop.trf.xlu0
        %v450 = vpop.trf.xlu0
        %v451 = vpop.trf.xlu0
        %v452 = vpop.trf.xlu0
        %v453 = vpop.trf.xlu0
        %v454 = vpop.trf.xlu0
        %v455 = vpop.trf.xlu0
        %v456 = vpop.trf.xlu0
        %v457 = vpop.trf.xlu0
        %v458 = vpop.trf.xlu0
        %v459 = vpop.trf.xlu0
        %v460 = vpop.trf.xlu0
        %v461 = vpop.trf.xlu0
        %v462 = vpop.trf.xlu0
        %463 = vst.msk [vmem:[%s187] sm:$0xff] %vm365, %v447
        %s464 = sand.u32 %s109, 1
        %s465 = scalar_lea.sflag [#allocation3], %s464
        %s466 = sand.u32 %s109, 1
        %s467 = smul.addr %s466, 8
        %s468 = scalar_lea.vmem [#allocation2], %s467
        // Predicated region
        $region33: #{tpu_custom_call.1} parent=31 // pred_check
          %p469 = pneg %p119
        $region34: #{tpu_custom_call.1} parent=31 // pred_check_branch
          %471 = sbr.rel (%p469) target = $region36
        $region35: #{tpu_custom_call.1} parent=31 // pred_region
          %473 = vsyncadd %s465, 0
          %s474 = sadd.s32 %s22, %s21
          %s475 = smul.addr %s474, 8
          %s476 = scalar_lea.hbm %s3, %s475
          %s478 = sshll.u32 %s468, 4
          %s479 = int_to_ptr.vmem [resolvable:$true] %s478
          %s480 = sshll.u32 %s476, 4
          %s481 = int_to_ptr.hbm [resolvable:$true] %s480
          %483 = dma.vmem_to_hbm [thread:$0]  %s479, 128, %s481, %s465
        $region36: #{tpu_custom_call.1} parent=31 // pred_fallthru
          _
      $region32: #{tpu_custom_call.1} parent=5 // pred_fallthru
        _
      %p484 = scmp.le.s32.totalorder 2, %s12
      // Predicated region
      $region37: #{tpu_custom_call.1} parent=5 // pred_check
        %p485 = pneg %p484
      $region38: #{tpu_custom_call.1} parent=5 // pred_check_branch
        %487 = sbr.rel (%p485) target = $region40
      $region39: #{tpu_custom_call.1} parent=5 // pred_region
        %s488 = ssub.s32 %s12, 2
        // Predicated region
        $region41: #{tpu_custom_call.1} parent=39 // pred_check
          %p489 = pneg %p125
        $region42: #{tpu_custom_call.1} parent=39 // pred_check_branch
          %491 = sbr.rel (%p489) target = $region44
        $region43: #{tpu_custom_call.1} parent=39 // pred_region
          %s492 = sand.u32 %s110, 1
          %s493 = scalar_lea.sflag [#allocation3], %s492
          %s494 = sand.u32 %s110, 1
          %s495 = smul.addr %s494, 8
          %s496 = scalar_lea.vmem [#allocation2], %s495
          %498 = dma.done %s493, 128
        $region44: #{tpu_custom_call.1} parent=39 // pred_fallthru
          _
      $region40: #{tpu_custom_call.1} parent=5 // pred_fallthru
        _
    $region6: #{tpu_custom_call.1} parent=1 // loop_footer
      %s16 = sadd.s32 1, %s12
    $region7: #{tpu_custom_call.1} parent=1 // loop_footer_branch
      %11 = sbr.rel target = $region3
    $region8: #{tpu_custom_call.1} parent=1 // loop_exit
      _
    %499 = vsyncpa [#allocation3], 1
    %s500 = scalar_lea.sflag [#allocation3], 1
    %501 = vsyncpa %s500, 1

</llo_original>
